<compile_context>
chip_gen: v5e
topology: v5e:2x2
jax: 0.10.0
libtpu: 0.0.40
codegen_flags: <defaults>
</compile_context>

<pallas_src>
import functools

import jax
import jax.numpy as jnp
from jax.experimental import pallas as pl
from jax.experimental.pallas import tpu as pltpu

# ------------------------------- config -------------------------------------
IMG = 16
PATCH = 4
IN_CH = 3
HIDDEN = 32
BATCH = 2
N_PATCHES = (IMG // PATCH) * (IMG // PATCH)   # 16
SEQ = N_PATCHES + 1                           # 17 (+1 cls token)
HP = 128                                      # lane-padded hidden width


# ------------------------------- kernel -------------------------------------
def embed_kernel(patch_ref, w_ref, b_ref, cls_ref, pos_ref, o_ref,
                 *, batch, n_patches):
    # patch_ref: (B*NP, K)   flattened patches (im2col)
    # w_ref:     (K, HP)     conv weight as matmul, zero-padded to 128 lanes
    # b_ref:     (1, HP)     conv bias (padded)
    # cls_ref:   (1, HP)     cls token (padded)
    # pos_ref:   (SEQ, HP)   position embeddings (padded)
    # o_ref:     (B, SEQ, HP)
    emb = jnp.dot(patch_ref[...], w_ref[...],
                  preferred_element_type=jnp.float32) + b_ref[0]      # (B*NP, HP)
    emb = emb.reshape(batch, n_patches, HP)                           # (B, NP, HP)
    cls = jnp.broadcast_to(cls_ref[...][None], (batch, 1, HP))        # (B, 1, HP)
    tokens = jnp.concatenate([cls, emb], axis=1)                      # (B, SEQ, HP)
    # Dropout is identity in eval mode.
    o_ref[...] = tokens + pos_ref[...][None]


# ------------------------------- wrappers ------------------------------------
def _patchify(x_nchw, patch):
    """(B, C, H, W) -> (B*n_patches, C*p*p), (c, kh, kw) flatten order."""
    B, C, H, W = x_nchw.shape
    hp, wp = H // patch, W // patch
    return (x_nchw.reshape(B, C, hp, patch, wp, patch)
            .transpose(0, 2, 4, 1, 3, 5)
            .reshape(B * hp * wp, C * patch * patch))


def _pad_cols(a, width):
    return jnp.pad(a, ((0, 0), (0, width - a.shape[1])))


def embedding_forward(x_nchw, params):
    B = x_nchw.shape[0]
    patches = _patchify(x_nchw, PATCH)                                # (B*NP, K)

    # Lane-pad hidden 32 -> 128 so the output store is full-width (unmasked);
    # the zero columns are sliced off below.
    w_p   = _pad_cols(params["conv_w"], HP)                           # (K, HP)
    b_p   = _pad_cols(params["conv_b"].reshape(1, HIDDEN), HP)        # (1, HP)
    cls_p = _pad_cols(params["cls_token"].reshape(1, HIDDEN), HP)     # (1, HP)
    pos_p = _pad_cols(params["pos_emb"].reshape(SEQ, HIDDEN), HP)     # (SEQ, HP)

    out = pl.pallas_call(
        functools.partial(embed_kernel, batch=B, n_patches=N_PATCHES),
        out_shape=jax.ShapeDtypeStruct((B, SEQ, HP), jnp.float32),
        in_specs=[pl.BlockSpec(memory_space=pltpu.MemorySpace.VMEM)] * 5,
        out_specs=pl.BlockSpec(memory_space=pltpu.MemorySpace.VMEM),
    )(patches, w_p, b_p, cls_p, pos_p)
    return out[:, :, :HIDDEN]                                         # (B, SEQ, H)


def embedding_ref(x_nchw, params):
    """Pure-JAX reference (same math, no Pallas) for correctness check."""
    B = x_nchw.shape[0]
    patches = _patchify(x_nchw, PATCH)
    emb = jnp.dot(patches, params["conv_w"],
                  precision=jax.lax.Precision.HIGHEST) + params["conv_b"]
    emb = emb.reshape(B, N_PATCHES, HIDDEN)
    cls = jnp.broadcast_to(params["cls_token"], (B, 1, HIDDEN))
    return jnp.concatenate([cls, emb], axis=1) + params["pos_emb"]


# --------------------------- parameter init ----------------------------------
def init_params(key):
    k_w, k_b, k_cls, k_pos = jax.random.split(key, 4)
    # Conv2d(IN_CH, HIDDEN, kernel=PATCH, stride=PATCH) weight: (out, in, kh, kw)
    conv_w = 0.05 * jax.random.normal(k_w, (HIDDEN, IN_CH, PATCH, PATCH),
                                      dtype=jnp.float32)
    return {
        # stored pre-transposed as (K, HIDDEN) so the kernel computes x @ W + b
        "conv_w": conv_w.reshape(HIDDEN, IN_CH * PATCH * PATCH).T,
        "conv_b": 0.05 * jax.random.normal(k_b, (HIDDEN,), dtype=jnp.float32),
        "cls_token": 0.02 * jax.random.normal(k_cls, (1, 1, HIDDEN),
                                              dtype=jnp.float32),
        "pos_emb": 0.02 * jax.random.normal(k_pos, (1, SEQ, HIDDEN),
                                            dtype=jnp.float32),
    }


# --------------------------------- main ---------------------------------------
if __name__ == "__main__":
    key = jax.random.PRNGKey(0)
    pkey, xkey = jax.random.split(key)
    params = init_params(pkey)
    x = jax.random.normal(xkey, (BATCH, IN_CH, IMG, IMG), dtype=jnp.float32)

    out = embedding_forward(x, params)
    out = jax.block_until_ready(out)
    assert out.shape == (BATCH, SEQ, HIDDEN), out.shape

    ref = embedding_ref(x, params)
    assert jnp.allclose(out, ref, atol=1e-3, rtol=1e-3), (
        float(jnp.max(jnp.abs(out - ref))))

    # TODO(synk): nn.Dropout is treated as identity (eval mode); no RNG dropout.
    print("KERNEL_OK")
</pallas_src>

<mosaic_0001>
module attributes {stable_mosaic.version = 11 : i64} {
  func.func @embed_kernel(%arg0: memref<32x48xf32, #tpu.memory_space<vmem>>, %arg1: memref<48x128xf32, #tpu.memory_space<vmem>>, %arg2: memref<1x128xf32, #tpu.memory_space<vmem>>, %arg3: memref<1x128xf32, #tpu.memory_space<vmem>>, %arg4: memref<17x128xf32, #tpu.memory_space<vmem>>, %arg5: memref<2x17x128xf32, #tpu.memory_space<vmem>>) attributes {dimension_semantics = [], scalar_prefetch = 0 : i64, scratch_operands = 0 : i64, tpu.core_type = #tpu.core_type<tc>} {
    %c0 = arith.constant 0 : index
    %c0_0 = arith.constant 0 : index
    %0 = vector.load %arg0[%c0, %c0_0] : memref<32x48xf32, #tpu.memory_space<vmem>>, vector<32x48xf32>
    %c0_1 = arith.constant 0 : index
    %c0_2 = arith.constant 0 : index
    %1 = vector.load %arg1[%c0_1, %c0_2] : memref<48x128xf32, #tpu.memory_space<vmem>>, vector<48x128xf32>
    %cst = arith.constant dense<0.000000e+00> : vector<32x128xf32>
    %2 = tpu.matmul %0, %1, %cst {dimension_numbers = #tpu.dot_dimension_numbers<[1], [0], [0], [1], [0, 0, 1, 1], [], []>} : vector<32x48xf32>, vector<48x128xf32>, vector<32x128xf32> -> vector<32x128xf32>
    %c0_3 = arith.constant 0 : index
    %c0_4 = arith.constant 0 : index
    %3 = vector.load %arg2[%c0_3, %c0_4] : memref<1x128xf32, #tpu.memory_space<vmem>>, vector<1x128xf32>
    %4 = vector.shape_cast %3 : vector<1x128xf32> to vector<128xf32>
    %5 = vector.shape_cast %4 : vector<128xf32> to vector<1x128xf32>
    %6 = vector.broadcast %5 : vector<1x128xf32> to vector<32x128xf32>
    %7 = arith.addf %2, %6 : vector<32x128xf32>
    %8 = vector.shape_cast %7 : vector<32x128xf32> to vector<2x16x128xf32>
    %c0_5 = arith.constant 0 : index
    %c0_6 = arith.constant 0 : index
    %9 = vector.load %arg3[%c0_5, %c0_6] : memref<1x128xf32, #tpu.memory_space<vmem>>, vector<1x128xf32>
    %10 = vector.shape_cast %9 : vector<1x128xf32> to vector<1x1x128xf32>
    %11 = vector.shape_cast %10 : vector<1x1x128xf32> to vector<1x1x128xf32>
    %12 = vector.broadcast %11 : vector<1x1x128xf32> to vector<2x1x128xf32>
    %13 = tpu.concatenate %12, %8 in 1 : vector<2x1x128xf32>, vector<2x16x128xf32> -> vector<2x17x128xf32>
    %c0_7 = arith.constant 0 : index
    %c0_8 = arith.constant 0 : index
    %14 = vector.load %arg4[%c0_7, %c0_8] : memref<17x128xf32, #tpu.memory_space<vmem>>, vector<17x128xf32>
    %15 = vector.shape_cast %14 : vector<17x128xf32> to vector<1x17x128xf32>
    %16 = vector.broadcast %15 : vector<1x17x128xf32> to vector<2x17x128xf32>
    %17 = arith.addf %13, %16 : vector<2x17x128xf32>
    %c0_9 = arith.constant 0 : index
    %c0_10 = arith.constant 0 : index
    %c0_11 = arith.constant 0 : index
    %18 = vector.load %arg5[%c0_9, %c0_10, %c0_11] : memref<2x17x128xf32, #tpu.memory_space<vmem>>, vector<2x17x128xf32>
    tpu.vector_store %arg5[%c0_9, %c0_10, %c0_11], %17 {strides = array<i32>} : memref<2x17x128xf32, #tpu.memory_space<vmem>>, vector<2x17x128xf32>,
    return
  }
}

</mosaic_0001>

<llo_original>
// kernel: tpu_custom_call.1
$region0: #{tpu_custom_call.1}
  #allocation0 [shape = 'u32[]', space=smem, size = 0x4, offset = 0x4, fixed_abs, tag = 'smem constant byte address 0x4 - core index']
  #allocation1 [shape = 'u32[72,128]{1,0:T(1,128)}', space=vmem, size = 0x9000, scoped, tag = 'internal scratch']
  %s0 = inlined_call_operand.hbm [shape: f32[32,48], index: 0, kind: input, shape index: {}]
  %s1 = inlined_call_operand.hbm [shape: f32[48,128], index: 1, kind: input, shape index: {}]
  %s2 = inlined_call_operand.vmem [shape: f32[1,128], index: 2, kind: input, shape index: {}]
  %s3 = inlined_call_operand.vmem [shape: f32[1,128], index: 3, kind: input, shape index: {}]
  %s4 = inlined_call_operand.hbm [shape: f32[17,128], index: 4, kind: input, shape index: {}]
  %s5 = inlined_call_operand.vmem [shape: f32[2,17,128], index: 5, kind: output, shape index: {}]
  %s6 = sld [smem:[#allocation0]]
  $region42: #{tpu_custom_call.1} parent=0
    _
  %s8 = ssub.s32 1, %s6
  %s9 = scalar_select 0, %s8, %s6
  $region1: #{tpu_custom_call.1} parent=0
    #allocation2 [shape = 'u8[16384]{0}', space=vmem, size = 0x4000, scoped, tag = 'input window, operand 0, single buffered']
    #allocation3 [shape = 's32[1]{0}', space=sflag, size = 0x4, scoped, tag = 'scoped memory for tpu_custom_call.1']
    #allocation4 [shape = 'u8[24576]{0}', space=vmem, size = 0x6000, scoped, tag = 'input window, operand 1, single buffered']
    #allocation5 [shape = 's32[1]{0}', space=sflag, size = 0x4, scoped, tag = 'scoped memory for tpu_custom_call.1']
    #allocation6 [shape = 'u8[12288]{0}', space=vmem, size = 0x3000, scoped, tag = 'input window, operand 4, single buffered']
    %10 = vsyncpa [#allocation3], 0
    %11 = vsyncpa [#allocation5], 0
    // Predicated region
    $region2: #{tpu_custom_call.1} parent=1 // pred_check
      _
    $region3: #{tpu_custom_call.1} parent=1 // pred_check_branch
      %13 = sbr.rel (0) target = $region5
    $region4: #{tpu_custom_call.1} parent=1 // pred_region
      %15 = vsyncadd [#allocation3], 0
      %s16 = sshll.u32 %s0, 4
      %s17 = int_to_ptr.hbm [resolvable:$true] %s16
      %s18 = sshll.u32 [#allocation2], 4
      %s19 = int_to_ptr.vmem [resolvable:$true] %s18
      %24 = dma.hbm_to_vmem [thread:$0]  %s17, 512, %s19, [#allocation3], 128, 128, 8
    $region5: #{tpu_custom_call.1} parent=1 // pred_fallthru
      _
    // Predicated region
    $region6: #{tpu_custom_call.1} parent=1 // pred_check
      _
    $region7: #{tpu_custom_call.1} parent=1 // pred_check_branch
      %26 = sbr.rel (0) target = $region9
    $region8: #{tpu_custom_call.1} parent=1 // pred_region
      %28 = vsyncadd [#allocation5], 0
      %s29 = sshll.u32 %s1, 4
      %s30 = int_to_ptr.hbm [resolvable:$true] %s29
      %s31 = sshll.u32 [#allocation4], 4
      %s32 = int_to_ptr.vmem [resolvable:$true] %s31
      %37 = dma.hbm_to_vmem [thread:$0]  %s30, 768, %s32, [#allocation5], 128, 128, 8
    $region9: #{tpu_custom_call.1} parent=1 // pred_fallthru
      _
    // Predicated region
    $region10: #{tpu_custom_call.1} parent=1 // pred_check
      _
    $region11: #{tpu_custom_call.1} parent=1 // pred_check_branch
      %39 = sbr.rel (0) target = $region13
    $region12: #{tpu_custom_call.1} parent=1 // pred_region
      _
    $region13: #{tpu_custom_call.1} parent=1 // pred_fallthru
      _
    // Predicated region
    $region14: #{tpu_custom_call.1} parent=1 // pred_check
      _
    $region15: #{tpu_custom_call.1} parent=1 // pred_check_branch
      %41 = sbr.rel (0) target = $region17
    $region16: #{tpu_custom_call.1} parent=1 // pred_region
      _
    $region17: #{tpu_custom_call.1} parent=1 // pred_fallthru
      _
    // Predicated region
    $region18: #{tpu_custom_call.1} parent=1 // pred_check
      _
    $region19: #{tpu_custom_call.1} parent=1 // pred_check_branch
      %43 = sbr.rel (0) target = $region21
    $region20: #{tpu_custom_call.1} parent=1 // pred_region
      %45 = vsyncadd [#allocation5], 0
      %s46 = sshll.u32 %s4, 4
      %s47 = int_to_ptr.hbm [resolvable:$true] %s46
      %s48 = sshll.u32 [#allocation6], 4
      %s49 = int_to_ptr.vmem [resolvable:$true] %s48
      %54 = dma.hbm_to_vmem [thread:$0]  %s47, 384, %s49, [#allocation5], 128, 128, 8
    $region21: #{tpu_custom_call.1} parent=1 // pred_fallthru
      _
    // Predicated region
    $region22: #{tpu_custom_call.1} parent=1 // pred_check
      _
    $region23: #{tpu_custom_call.1} parent=1 // pred_check_branch
      %56 = sbr.rel (0) target = $region25
    $region24: #{tpu_custom_call.1} parent=1 // pred_region
      %58 = dma.done [#allocation3], 512
    $region25: #{tpu_custom_call.1} parent=1 // pred_fallthru
      _
    // Predicated region
    $region26: #{tpu_custom_call.1} parent=1 // pred_check
      _
    $region27: #{tpu_custom_call.1} parent=1 // pred_check_branch
      %60 = sbr.rel (0) target = $region29
    $region28: #{tpu_custom_call.1} parent=1 // pred_region
      %62 = dma.done [#allocation5], 768
    $region29: #{tpu_custom_call.1} parent=1 // pred_fallthru
      _
    // Predicated region
    $region30: #{tpu_custom_call.1} parent=1 // pred_check
      _
    $region31: #{tpu_custom_call.1} parent=1 // pred_check_branch
      %64 = sbr.rel (0) target = $region33
    $region32: #{tpu_custom_call.1} parent=1 // pred_region
      %66 = dma.done [#allocation5], 384
    $region33: #{tpu_custom_call.1} parent=1 // pred_fallthru
      _
    %v67 = vld [vmem:[#allocation2] sm:$0xff]
    %v68 = vld [vmem:[#allocation2 + $0x8] sm:$0xff]
    %v69 = vld [vmem:[#allocation2 + $0x10] sm:$0xff]
    %v70 = vld [vmem:[#allocation2 + $0x18] sm:$0xff]
    %v71 = vld [vmem:[#allocation4] sm:$0xff]
    %v72 = vld [vmem:[#allocation4 + $0x8] sm:$0xff]
    %v73 = vld [vmem:[#allocation4 + $0x10] sm:$0xff]
    %v74 = vld [vmem:[#allocation4 + $0x18] sm:$0xff]
    %v75 = vld [vmem:[#allocation4 + $0x20] sm:$0xff]
    %v76 = vld [vmem:[#allocation4 + $0x28] sm:$0xff]
    %v77 = vld [vmem:[%s2] sm:$0x1]
    %v79 = vperm.slane %v77, 0
    %vm81 = vcmask 392192
    %v83 = vsel %vm81, %v67, 0
    %v86 = vsel %vm81, %v68, 0
    %v89 = vsel %vm81, %v69, 0
    %v92 = vsel %vm81, %v70, 0
    %94 = vmatpush.msra.mxu0 0.0
    %95 = vmatpush.msra.mxu0 0.0
    %96 = vmatpush.msra.mxu0 0.0
    %97 = vmatpush.msra.mxu0 0.0
    %98 = vmatpush.msra.mxu0 0.0
    %99 = vmatpush.msra.mxu0 0.0
    %100 = vmatpush.msra.mxu0 0.0
    %101 = vmatpush.msra.mxu0 0.0
    %102 = vmatpush.msra.mxu0 0.0
    %103 = vmatpush.msra.mxu0 0.0
    %104 = vmatpush.msra.mxu0 %v76
    %105 = vmatpush.msra.mxu0 %v75
    %106 = vmatpush.msra.mxu0 %v74
    %107 = vmatpush.msra.mxu0 %v73
    %108 = vmatpush.msra.mxu0 %v72
    %109 = vmatpush.msra.mxu0 %v71
    %110 = vmatmul.f32.gmra.mxu0 %v83
    %v111 = vpop.f32.mrf.mxu0
    %v112 = vadd.f32 %v79, %v111
    %113 = vmatmul.f32.gmra.mxu0 %v86
    %v114 = vpop.f32.mrf.mxu0
    %v115 = vadd.f32 %v79, %v114
    %116 = vmatmul.f32.gmra.mxu0 %v89
    %v117 = vpop.f32.mrf.mxu0
    %v118 = vadd.f32 %v79, %v117
    %119 = vmatmul.f32.gmra.mxu0 %v92
    %v120 = vpop.f32.mrf.mxu0
    %v121 = vadd.f32 %v79, %v120
    %122 = vdwg.mxu0
    %v123 = vld [vmem:[%s3] sm:$0x1]
    %vm128 = vcmask 1040384
    %v129 = vrot.slane %v112, 7
    %v130 = vrot.slane %v115, 7
    %v131 = vsel %vm128, %v129, %v130
    %v132 = vrot.slane %v118, 7
    %v133 = vrot.slane %v121, 7
    %v134 = vsel %vm128, %v132, %v133
    %v141 = vsel %vm128, %v123, %v129
    %v142 = vsel %vm128, %v123, %v132
    %v143 = vld [vmem:[#allocation6] sm:$0xff]
    %v144 = vld [vmem:[#allocation6 + $0x8] sm:$0xff]
    %v145 = vld [vmem:[#allocation6 + $0x10] sm:$0x1]
    %v146 = vadd.f32 %v141, %v143
    %v147 = vadd.f32 %v131, %v144
    %v148 = vadd.f32 %v130, %v145
    %v149 = vadd.f32 %v142, %v143
    %v150 = vadd.f32 %v134, %v144
    %v151 = vadd.f32 %v133, %v145
    %152 = vst [vmem:[%s5] sm:$0xff] %v146
    %153 = vst [vmem:[%s5 + $0x8] sm:$0xff] %v147
    %154 = vst [vmem:[%s5 + $0x10] sm:$0x1] %v148
    %155 = vst [vmem:[%s5 + $0x18] sm:$0xff] %v149
    %156 = vst [vmem:[%s5 + $0x20] sm:$0xff] %v150
    %157 = vst [vmem:[%s5 + $0x28] sm:$0x1] %v151
    // Predicated region
    $region34: #{tpu_custom_call.1} parent=1 // pred_check
      _
    $region35: #{tpu_custom_call.1} parent=1 // pred_check_branch
      %159 = sbr.rel (0) target = $region37
    $region36: #{tpu_custom_call.1} parent=1 // pred_region
      _
    $region37: #{tpu_custom_call.1} parent=1 // pred_fallthru
      _
    // Predicated region
    $region38: #{tpu_custom_call.1} parent=1 // pred_check
      _
    $region39: #{tpu_custom_call.1} parent=1 // pred_check_branch
      %161 = sbr.rel (0) target = $region41
    $region40: #{tpu_custom_call.1} parent=1 // pred_region
      _
    $region41: #{tpu_custom_call.1} parent=1 // pred_fallthru
      _
    %162 = vsyncpa [#allocation3], 1
    %163 = vsyncpa [#allocation5], 1

</llo_original>
